<compile_context>
chip_gen: v7x
topology: tpu7x:2x2x1
jax: 0.10.0
libtpu: 0.0.40
codegen_flags: <defaults>
</compile_context>

<pallas_src>
import functools

import jax
import jax.numpy as jnp
from jax.experimental import pallas as pl
from jax.experimental.pallas import tpu as pltpu


# ---------------------------------------------------------------------------
# Batcher odd-even merge sorting network (host-side comparator list).
# ---------------------------------------------------------------------------
def _oddeven_merge(lo, hi, r, pairs):
    step = r * 2
    if step < hi - lo:
        _oddeven_merge(lo, hi, step, pairs)
        _oddeven_merge(lo + r, hi, step, pairs)
        for i in range(lo + r, hi - r, step):
            pairs.append((i, i + r))
    else:
        pairs.append((lo, lo + r))


def _oddeven_merge_sort(lo, hi, pairs):
    if hi - lo >= 1:
        mid = lo + (hi - lo) // 2
        _oddeven_merge_sort(lo, mid, pairs)
        _oddeven_merge_sort(mid + 1, hi, pairs)
        _oddeven_merge(lo, hi, 1, pairs)


@functools.lru_cache(maxsize=None)
def _sorting_network(n):
    """Comparator list (i, j) with i < j for a power-of-two n (63 pairs @ n=16)."""
    pairs = []
    if n > 1:
        _oddeven_merge_sort(0, n - 1, pairs)
    return tuple(pairs)


def _next_pow2(n):
    p = 1
    while p < n:
        p *= 2
    return p


# ---------------------------------------------------------------------------
# Kernel
# ---------------------------------------------------------------------------
def sorted_mlp_kernel(xt_ref,
                      w1t_ref, b1_ref, w2t_ref, b2_ref, w3t_ref, b3_ref,
                      a1_ref, a2_ref,
                      o_ref,
                      xs_ref):
    # xt_ref : (N, bb)   batch on the lane axis (lane-dense loads)
    # o_ref  : (D_out, bb)
    # xs_ref : (N, bb)   VMEM scratch holding the sorted set
    n = xt_ref.shape[0]

    # ---- fused torch.sort(dim=1): Batcher network over the N sublane rows ----
    rows = [xt_ref[i, :] for i in range(n)]            # each row: (bb,)
    p = _next_pow2(n)
    if p > n:                                           # pad to power of two
        pad = jnp.full_like(rows[0], jnp.inf)           # +inf sorts past index n
        rows = rows + [pad] * (p - n)
    for i, j in _sorting_network(p):
        lo = jnp.minimum(rows[i], rows[j])
        hi = jnp.maximum(rows[i], rows[j])
        rows[i], rows[j] = lo, hi
    for i in range(n):
        xs_ref[i, :] = rows[i]

    xs = xs_ref[...]                                    # (N, bb) sorted ascending

    a1 = a1_ref[0]                                      # PReLU slopes from SMEM
    a2 = a2_ref[0]

    # Linear(N -> 50) + PReLU : (H, N) @ (N, bb) -> (H, bb)
    h = jnp.dot(w1t_ref[...], xs, preferred_element_type=jnp.float32) + b1_ref[...]
    h = jnp.where(h > 0.0, h, h * a1)

    # Linear(50 -> 50) + PReLU
    h = jnp.dot(w2t_ref[...], h, preferred_element_type=jnp.float32) + b2_ref[...]
    h = jnp.where(h > 0.0, h, h * a2)

    # Final Linear(50 -> D_out) : (D_out, H) @ (H, bb) -> (D_out, bb)
    out = jnp.dot(w3t_ref[...], h, preferred_element_type=jnp.float32) + b3_ref[...]
    o_ref[...] = out.astype(o_ref.dtype)


# ---------------------------------------------------------------------------
# Wrapper
# ---------------------------------------------------------------------------
def _pick_block_b(B, *, max_bb=4096):
    """Batch-chunk size (lane axis).

    * Single grid step whenever the whole batch fits one small VMEM block
      (on 1-TC v5e/v6e the grid is a serial loop, so splitting tiny work only
      adds ~0.35us/step).
    * 2-way split only when each v7x core still gets >= 512 lane-aligned rows.
    * For large B: the biggest multiple-of-128 chunk (<= max_bb) dividing B,
      so no padding pass is needed.  VMEM cost at bb=4096 is ~1 MiB, far under
      v7x's 64 MiB physical / 32 MiB scoped-default VMEM.
    """
    if B <= max_bb:
        if B >= 1024 and B % 256 == 0:
            return B // 2
        return B
    for bb in range(max_bb, 127, -128):
        if B % bb == 0:
            return bb
    return max_bb  # rare fallback: ragged tail handled by padding below


def sorted_mlp(x, mask, params, *, block_b=None):
    """x: (B, N, 1) f32, mask: (B, N, 1) (unused by the module) -> (B, D_out) f32."""
    del mask  # Mlp.forward drops the mask; kept in the signature for API parity.
    w1, b1, a1, w2, b2, a2, w3, b3 = params
    B, N, _ = x.shape
    H = w1.shape[1]
    D_out = w3.shape[1]

    # Batch on the lane axis: kernel sees x^T (N, B) and transposed weights and
    # writes a lane-dense (D_out, B) output.  The squeeze+transpose is the only
    # wrapper-side pass; the sort itself is fused into the kernel.
    xt = jnp.transpose(x[..., 0])                        # (N, B)

    bb = _pick_block_b(B) if block_b is None else block_b
    Bp = pl.cdiv(B, bb) * bb
    if Bp != B:
        # TODO(synk): only reached when B has no lane-aligned divisor; a clamped
        # index_map + masked tail store would remove this extra HBM pass.
        xt = jnp.pad(xt, ((0, 0), (0, Bp - B)))

    # Transposed weights (tiny, resident in VMEM across grid steps).
    w1t, w2t, w3t = w1.T, w2.T, w3.T                     # (H,N), (H,H), (D_out,H)
    b1t = b1.reshape(H, 1)
    b2t = b2.reshape(H, 1)
    b3t = b3.reshape(D_out, 1)
    a1s = a1.reshape(1)                                  # SMEM scalars
    a2s = a2.reshape(1)

    resident = lambda a: pl.BlockSpec(a.shape, lambda i: (0,) * a.ndim)
    smem = pl.BlockSpec(memory_space=pltpu.MemorySpace.SMEM)

    out_t = pl.pallas_call(
        sorted_mlp_kernel,
        out_shape=jax.ShapeDtypeStruct((D_out, Bp), jnp.float32),
        grid=(Bp // bb,),
        in_specs=[
            pl.BlockSpec((N, bb), lambda i: (0, i)),     # x^T batch chunk
            resident(w1t), resident(b1t),
            resident(w2t), resident(b2t),
            resident(w3t), resident(b3t),
            smem, smem,                                  # PReLU slopes
        ],
        out_specs=pl.BlockSpec((D_out, bb), lambda i: (0, i)),
        scratch_shapes=[pltpu.VMEM((N, bb), jnp.float32)],
        compiler_params=pltpu.CompilerParams(
            dimension_semantics=("parallel",)),
    )(xt, w1t, b1t, w2t, b2t, w3t, b3t, a1s, a2s)

    return out_t[:, :B].T                                # (B, D_out)


# ---------------------------------------------------------------------------
# Reference + params
# ---------------------------------------------------------------------------
def _reference(x, mask, params):
    del mask
    w1, b1, a1, w2, b2, a2, w3, b3 = params
    xs = jnp.sort(x, axis=1)[..., 0]
    h = xs @ w1 + b1
    h = jnp.where(h > 0.0, h, a1 * h)
    h = h @ w2 + b2
    h = jnp.where(h > 0.0, h, a2 * h)
    return h @ w3 + b3


def make_params(key, input_dim, output_dim, hidden=50):
    ks = jax.random.split(key, 6)
    s = 0.1
    w1 = s * jax.random.normal(ks[0], (input_dim, hidden), jnp.float32)
    b1 = s * jax.random.normal(ks[1], (1, hidden), jnp.float32)
    a1 = jnp.full((1, 1), 0.25, jnp.float32)   # nn.PReLU() default init
    w2 = s * jax.random.normal(ks[2], (hidden, hidden), jnp.float32)
    b2 = s * jax.random.normal(ks[3], (1, hidden), jnp.float32)
    a2 = jnp.full((1, 1), 0.25, jnp.float32)
    w3 = s * jax.random.normal(ks[4], (hidden, output_dim), jnp.float32)
    b3 = s * jax.random.normal(ks[5], (1, output_dim), jnp.float32)
    return (w1, b1, a1, w2, b2, a2, w3, b3)


if __name__ == "__main__":
    # input_dim = N = 16 (set size), hidden = 50 (fixed by the module), output_dim = 8
    B, N, D_out = 64, 16, 8

    key = jax.random.PRNGKey(0)
    kx, kp, km = jax.random.split(key, 3)

    x = jax.random.normal(kx, (B, N, 1), jnp.float32)
    mask = (jax.random.uniform(km, (B, N, 1)) > 0.3).astype(jnp.float32)
    params = make_params(kp, input_dim=N, output_dim=D_out)

    out = sorted_mlp(x, mask, params)
    out = jax.block_until_ready(out)

    ref = _reference(x, mask, params)
    assert out.shape == (B, D_out)
    assert jnp.allclose(out, ref, atol=1e-5, rtol=1e-5), "mismatch vs. reference"

    print("KERNEL_OK")
</pallas_src>

<mosaic_0001>
module attributes {stable_mosaic.version = 11 : i64} {
  func.func @sorted_mlp_kernel(%arg0: i32, %arg1: memref<16x64xf32, #tpu.memory_space<vmem>>, %arg2: memref<50x16xf32, #tpu.memory_space<vmem>>, %arg3: memref<50x1xf32, #tpu.memory_space<vmem>>, %arg4: memref<50x50xf32, #tpu.memory_space<vmem>>, %arg5: memref<50x1xf32, #tpu.memory_space<vmem>>, %arg6: memref<8x50xf32, #tpu.memory_space<vmem>>, %arg7: memref<8x1xf32, #tpu.memory_space<vmem>>, %arg8: memref<1xf32, #tpu.memory_space<smem>>, %arg9: memref<1xf32, #tpu.memory_space<smem>>, %arg10: memref<8x64xf32, #tpu.memory_space<vmem>>, %arg11: memref<16x64xf32, #tpu.memory_space<vmem>>) attributes {dimension_semantics = [#tpu.dimension_semantics<parallel>], iteration_bounds = array<i64: 1>, scalar_prefetch = 0 : i64, scratch_operands = 1 : i64, tpu.core_type = #tpu.core_type<tc>, window_params = [{transform_indices = @transform_0, window_bounds = array<i64: 16, 64>}, {pipeline_mode = #tpu.pipeline_mode<synchronous>, transform_indices = @transform_1, window_bounds = array<i64: 50, 16>}, {pipeline_mode = #tpu.pipeline_mode<synchronous>, transform_indices = @transform_2, window_bounds = array<i64: 50, 1>}, {pipeline_mode = #tpu.pipeline_mode<synchronous>, transform_indices = @transform_3, window_bounds = array<i64: 50, 50>}, {pipeline_mode = #tpu.pipeline_mode<synchronous>, transform_indices = @transform_4, window_bounds = array<i64: 50, 1>}, {pipeline_mode = #tpu.pipeline_mode<synchronous>, transform_indices = @transform_5, window_bounds = array<i64: 8, 50>}, {pipeline_mode = #tpu.pipeline_mode<synchronous>, transform_indices = @transform_6, window_bounds = array<i64: 8, 1>}, {transform_indices = @transform_7, window_bounds = array<i64: 1>}, {transform_indices = @transform_8, window_bounds = array<i64: 1>}, {transform_indices = @transform_9, window_bounds = array<i64: 8, 64>}]} {
    %c0 = arith.constant 0 : index
    %c0_0 = arith.constant 0 : index
    %0 = vector.load %arg1[%c0, %c0_0] : memref<16x64xf32, #tpu.memory_space<vmem>>, vector<1x64xf32>
    %1 = vector.shape_cast %0 : vector<1x64xf32> to vector<64xf32>
    %c1 = arith.constant 1 : index
    %c0_1 = arith.constant 0 : index
    %2 = vector.load %arg1[%c1, %c0_1] : memref<16x64xf32, #tpu.memory_space<vmem>>, vector<1x64xf32>
    %3 = vector.shape_cast %2 : vector<1x64xf32> to vector<64xf32>
    %c2 = arith.constant 2 : index
    %c0_2 = arith.constant 0 : index
    %4 = vector.load %arg1[%c2, %c0_2] : memref<16x64xf32, #tpu.memory_space<vmem>>, vector<1x64xf32>
    %5 = vector.shape_cast %4 : vector<1x64xf32> to vector<64xf32>
    %c3 = arith.constant 3 : index
    %c0_3 = arith.constant 0 : index
    %6 = vector.load %arg1[%c3, %c0_3] : memref<16x64xf32, #tpu.memory_space<vmem>>, vector<1x64xf32>
    %7 = vector.shape_cast %6 : vector<1x64xf32> to vector<64xf32>
    %c4 = arith.constant 4 : index
    %c0_4 = arith.constant 0 : index
    %8 = vector.load %arg1[%c4, %c0_4] : memref<16x64xf32, #tpu.memory_space<vmem>>, vector<1x64xf32>
    %9 = vector.shape_cast %8 : vector<1x64xf32> to vector<64xf32>
    %c5 = arith.constant 5 : index
    %c0_5 = arith.constant 0 : index
    %10 = vector.load %arg1[%c5, %c0_5] : memref<16x64xf32, #tpu.memory_space<vmem>>, vector<1x64xf32>
    %11 = vector.shape_cast %10 : vector<1x64xf32> to vector<64xf32>
    %c6 = arith.constant 6 : index
    %c0_6 = arith.constant 0 : index
    %12 = vector.load %arg1[%c6, %c0_6] : memref<16x64xf32, #tpu.memory_space<vmem>>, vector<1x64xf32>
    %13 = vector.shape_cast %12 : vector<1x64xf32> to vector<64xf32>
    %c7 = arith.constant 7 : index
    %c0_7 = arith.constant 0 : index
    %14 = vector.load %arg1[%c7, %c0_7] : memref<16x64xf32, #tpu.memory_space<vmem>>, vector<1x64xf32>
    %15 = vector.shape_cast %14 : vector<1x64xf32> to vector<64xf32>
    %c8 = arith.constant 8 : index
    %c0_8 = arith.constant 0 : index
    %16 = vector.load %arg1[%c8, %c0_8] : memref<16x64xf32, #tpu.memory_space<vmem>>, vector<1x64xf32>
    %17 = vector.shape_cast %16 : vector<1x64xf32> to vector<64xf32>
    %c9 = arith.constant 9 : index
    %c0_9 = arith.constant 0 : index
    %18 = vector.load %arg1[%c9, %c0_9] : memref<16x64xf32, #tpu.memory_space<vmem>>, vector<1x64xf32>
    %19 = vector.shape_cast %18 : vector<1x64xf32> to vector<64xf32>
    %c10 = arith.constant 10 : index
    %c0_10 = arith.constant 0 : index
    %20 = vector.load %arg1[%c10, %c0_10] : memref<16x64xf32, #tpu.memory_space<vmem>>, vector<1x64xf32>
    %21 = vector.shape_cast %20 : vector<1x64xf32> to vector<64xf32>
    %c11 = arith.constant 11 : index
    %c0_11 = arith.constant 0 : index
    %22 = vector.load %arg1[%c11, %c0_11] : memref<16x64xf32, #tpu.memory_space<vmem>>, vector<1x64xf32>
    %23 = vector.shape_cast %22 : vector<1x64xf32> to vector<64xf32>
    %c12 = arith.constant 12 : index
    %c0_12 = arith.constant 0 : index
    %24 = vector.load %arg1[%c12, %c0_12] : memref<16x64xf32, #tpu.memory_space<vmem>>, vector<1x64xf32>
    %25 = vector.shape_cast %24 : vector<1x64xf32> to vector<64xf32>
    %c13 = arith.constant 13 : index
    %c0_13 = arith.constant 0 : index
    %26 = vector.load %arg1[%c13, %c0_13] : memref<16x64xf32, #tpu.memory_space<vmem>>, vector<1x64xf32>
    %27 = vector.shape_cast %26 : vector<1x64xf32> to vector<64xf32>
    %c14 = arith.constant 14 : index
    %c0_14 = arith.constant 0 : index
    %28 = vector.load %arg1[%c14, %c0_14] : memref<16x64xf32, #tpu.memory_space<vmem>>, vector<1x64xf32>
    %29 = vector.shape_cast %28 : vector<1x64xf32> to vector<64xf32>
    %c15 = arith.constant 15 : index
    %c0_15 = arith.constant 0 : index
    %30 = vector.load %arg1[%c15, %c0_15] : memref<16x64xf32, #tpu.memory_space<vmem>>, vector<1x64xf32>
    %31 = vector.shape_cast %30 : vector<1x64xf32> to vector<64xf32>
    %32 = arith.minimumf %1, %3 : vector<64xf32>
    %33 = arith.maximumf %1, %3 : vector<64xf32>
    %34 = arith.minimumf %5, %7 : vector<64xf32>
    %35 = arith.maximumf %5, %7 : vector<64xf32>
    %36 = arith.minimumf %32, %34 : vector<64xf32>
    %37 = arith.maximumf %32, %34 : vector<64xf32>
    %38 = arith.minimumf %33, %35 : vector<64xf32>
    %39 = arith.maximumf %33, %35 : vector<64xf32>
    %40 = arith.minimumf %38, %37 : vector<64xf32>
    %41 = arith.maximumf %38, %37 : vector<64xf32>
    %42 = arith.minimumf %9, %11 : vector<64xf32>
    %43 = arith.maximumf %9, %11 : vector<64xf32>
    %44 = arith.minimumf %13, %15 : vector<64xf32>
    %45 = arith.maximumf %13, %15 : vector<64xf32>
    %46 = arith.minimumf %42, %44 : vector<64xf32>
    %47 = arith.maximumf %42, %44 : vector<64xf32>
    %48 = arith.minimumf %43, %45 : vector<64xf32>
    %49 = arith.maximumf %43, %45 : vector<64xf32>
    %50 = arith.minimumf %48, %47 : vector<64xf32>
    %51 = arith.maximumf %48, %47 : vector<64xf32>
    %52 = arith.minimumf %36, %46 : vector<64xf32>
    %53 = arith.maximumf %36, %46 : vector<64xf32>
    %54 = arith.minimumf %41, %51 : vector<64xf32>
    %55 = arith.maximumf %41, %51 : vector<64xf32>
    %56 = arith.minimumf %54, %53 : vector<64xf32>
    %57 = arith.maximumf %54, %53 : vector<64xf32>
    %58 = arith.minimumf %40, %50 : vector<64xf32>
    %59 = arith.maximumf %40, %50 : vector<64xf32>
    %60 = arith.minimumf %39, %49 : vector<64xf32>
    %61 = arith.maximumf %39, %49 : vector<64xf32>
    %62 = arith.minimumf %60, %59 : vector<64xf32>
    %63 = arith.maximumf %60, %59 : vector<64xf32>
    %64 = arith.minimumf %58, %56 : vector<64xf32>
    %65 = arith.maximumf %58, %56 : vector<64xf32>
    %66 = arith.minimumf %62, %57 : vector<64xf32>
    %67 = arith.maximumf %62, %57 : vector<64xf32>
    %68 = arith.minimumf %63, %55 : vector<64xf32>
    %69 = arith.maximumf %63, %55 : vector<64xf32>
    %70 = arith.minimumf %17, %19 : vector<64xf32>
    %71 = arith.maximumf %17, %19 : vector<64xf32>
    %72 = arith.minimumf %21, %23 : vector<64xf32>
    %73 = arith.maximumf %21, %23 : vector<64xf32>
    %74 = arith.minimumf %70, %72 : vector<64xf32>
    %75 = arith.maximumf %70, %72 : vector<64xf32>
    %76 = arith.minimumf %71, %73 : vector<64xf32>
    %77 = arith.maximumf %71, %73 : vector<64xf32>
    %78 = arith.minimumf %76, %75 : vector<64xf32>
    %79 = arith.maximumf %76, %75 : vector<64xf32>
    %80 = arith.minimumf %25, %27 : vector<64xf32>
    %81 = arith.maximumf %25, %27 : vector<64xf32>
    %82 = arith.minimumf %29, %31 : vector<64xf32>
    %83 = arith.maximumf %29, %31 : vector<64xf32>
    %84 = arith.minimumf %80, %82 : vector<64xf32>
    %85 = arith.maximumf %80, %82 : vector<64xf32>
    %86 = arith.minimumf %81, %83 : vector<64xf32>
    %87 = arith.maximumf %81, %83 : vector<64xf32>
    %88 = arith.minimumf %86, %85 : vector<64xf32>
    %89 = arith.maximumf %86, %85 : vector<64xf32>
    %90 = arith.minimumf %74, %84 : vector<64xf32>
    %91 = arith.maximumf %74, %84 : vector<64xf32>
    %92 = arith.minimumf %79, %89 : vector<64xf32>
    %93 = arith.maximumf %79, %89 : vector<64xf32>
    %94 = arith.minimumf %92, %91 : vector<64xf32>
    %95 = arith.maximumf %92, %91 : vector<64xf32>
    %96 = arith.minimumf %78, %88 : vector<64xf32>
    %97 = arith.maximumf %78, %88 : vector<64xf32>
    %98 = arith.minimumf %77, %87 : vector<64xf32>
    %99 = arith.maximumf %77, %87 : vector<64xf32>
    %100 = arith.minimumf %98, %97 : vector<64xf32>
    %101 = arith.maximumf %98, %97 : vector<64xf32>
    %102 = arith.minimumf %96, %94 : vector<64xf32>
    %103 = arith.maximumf %96, %94 : vector<64xf32>
    %104 = arith.minimumf %100, %95 : vector<64xf32>
    %105 = arith.maximumf %100, %95 : vector<64xf32>
    %106 = arith.minimumf %101, %93 : vector<64xf32>
    %107 = arith.maximumf %101, %93 : vector<64xf32>
    %108 = arith.minimumf %52, %90 : vector<64xf32>
    %109 = arith.maximumf %52, %90 : vector<64xf32>
    %110 = arith.minimumf %67, %105 : vector<64xf32>
    %111 = arith.maximumf %67, %105 : vector<64xf32>
    %112 = arith.minimumf %110, %109 : vector<64xf32>
    %113 = arith.maximumf %110, %109 : vector<64xf32>
    %114 = arith.minimumf %65, %103 : vector<64xf32>
    %115 = arith.maximumf %65, %103 : vector<64xf32>
    %116 = arith.minimumf %69, %107 : vector<64xf32>
    %117 = arith.maximumf %69, %107 : vector<64xf32>
    %118 = arith.minimumf %116, %115 : vector<64xf32>
    %119 = arith.maximumf %116, %115 : vector<64xf32>
    %120 = arith.minimumf %114, %112 : vector<64xf32>
    %121 = arith.maximumf %114, %112 : vector<64xf32>
    %122 = arith.minimumf %118, %113 : vector<64xf32>
    %123 = arith.maximumf %118, %113 : vector<64xf32>
    %124 = arith.minimumf %119, %111 : vector<64xf32>
    %125 = arith.maximumf %119, %111 : vector<64xf32>
    %126 = arith.minimumf %64, %102 : vector<64xf32>
    %127 = arith.maximumf %64, %102 : vector<64xf32>
    %128 = arith.minimumf %68, %106 : vector<64xf32>
    %129 = arith.maximumf %68, %106 : vector<64xf32>
    %130 = arith.minimumf %128, %127 : vector<64xf32>
    %131 = arith.maximumf %128, %127 : vector<64xf32>
    %132 = arith.minimumf %66, %104 : vector<64xf32>
    %133 = arith.maximumf %66, %104 : vector<64xf32>
    %134 = arith.minimumf %61, %99 : vector<64xf32>
    %135 = arith.maximumf %61, %99 : vector<64xf32>
    %136 = arith.minimumf %134, %133 : vector<64xf32>
    %137 = arith.maximumf %134, %133 : vector<64xf32>
    %138 = arith.minimumf %132, %130 : vector<64xf32>
    %139 = arith.maximumf %132, %130 : vector<64xf32>
    %140 = arith.minimumf %136, %131 : vector<64xf32>
    %141 = arith.maximumf %136, %131 : vector<64xf32>
    %142 = arith.minimumf %137, %129 : vector<64xf32>
    %143 = arith.maximumf %137, %129 : vector<64xf32>
    %144 = arith.minimumf %126, %120 : vector<64xf32>
    %145 = arith.maximumf %126, %120 : vector<64xf32>
    %146 = arith.minimumf %138, %121 : vector<64xf32>
    %147 = arith.maximumf %138, %121 : vector<64xf32>
    %148 = arith.minimumf %139, %122 : vector<64xf32>
    %149 = arith.maximumf %139, %122 : vector<64xf32>
    %150 = arith.minimumf %140, %123 : vector<64xf32>
    %151 = arith.maximumf %140, %123 : vector<64xf32>
    %152 = arith.minimumf %141, %124 : vector<64xf32>
    %153 = arith.maximumf %141, %124 : vector<64xf32>
    %154 = arith.minimumf %142, %125 : vector<64xf32>
    %155 = arith.maximumf %142, %125 : vector<64xf32>
    %156 = arith.minimumf %143, %117 : vector<64xf32>
    %157 = arith.maximumf %143, %117 : vector<64xf32>
    %c0_16 = arith.constant 0 : index
    %c0_17 = arith.constant 0 : index
    %158 = vector.load %arg11[%c0_16, %c0_17] : memref<16x64xf32, #tpu.memory_space<vmem>>, vector<1x64xf32>
    %159 = vector.shape_cast %158 : vector<1x64xf32> to vector<64xf32>
    %160 = vector.shape_cast %108 : vector<64xf32> to vector<1x64xf32>
    tpu.vector_store %arg11[%c0_16, %c0_17], %160 {strides = array<i32>} : memref<16x64xf32, #tpu.memory_space<vmem>>, vector<1x64xf32>,
    %c1_18 = arith.constant 1 : index
    %c0_19 = arith.constant 0 : index
    %161 = vector.load %arg11[%c1_18, %c0_19] : memref<16x64xf32, #tpu.memory_space<vmem>>, vector<1x64xf32>
    %162 = vector.shape_cast %161 : vector<1x64xf32> to vector<64xf32>
    %163 = vector.shape_cast %144 : vector<64xf32> to vector<1x64xf32>
    tpu.vector_store %arg11[%c1_18, %c0_19], %163 {strides = array<i32>} : memref<16x64xf32, #tpu.memory_space<vmem>>, vector<1x64xf32>,
    %c2_20 = arith.constant 2 : index
    %c0_21 = arith.constant 0 : index
    %164 = vector.load %arg11[%c2_20, %c0_21] : memref<16x64xf32, #tpu.memory_space<vmem>>, vector<1x64xf32>
    %165 = vector.shape_cast %164 : vector<1x64xf32> to vector<64xf32>
    %166 = vector.shape_cast %145 : vector<64xf32> to vector<1x64xf32>
    tpu.vector_store %arg11[%c2_20, %c0_21], %166 {strides = array<i32>} : memref<16x64xf32, #tpu.memory_space<vmem>>, vector<1x64xf32>,
    %c3_22 = arith.constant 3 : index
    %c0_23 = arith.constant 0 : index
    %167 = vector.load %arg11[%c3_22, %c0_23] : memref<16x64xf32, #tpu.memory_space<vmem>>, vector<1x64xf32>
    %168 = vector.shape_cast %167 : vector<1x64xf32> to vector<64xf32>
    %169 = vector.shape_cast %146 : vector<64xf32> to vector<1x64xf32>
    tpu.vector_store %arg11[%c3_22, %c0_23], %169 {strides = array<i32>} : memref<16x64xf32, #tpu.memory_space<vmem>>, vector<1x64xf32>,
    %c4_24 = arith.constant 4 : index
    %c0_25 = arith.constant 0 : index
    %170 = vector.load %arg11[%c4_24, %c0_25] : memref<16x64xf32, #tpu.memory_space<vmem>>, vector<1x64xf32>
    %171 = vector.shape_cast %170 : vector<1x64xf32> to vector<64xf32>
    %172 = vector.shape_cast %147 : vector<64xf32> to vector<1x64xf32>
    tpu.vector_store %arg11[%c4_24, %c0_25], %172 {strides = array<i32>} : memref<16x64xf32, #tpu.memory_space<vmem>>, vector<1x64xf32>,
    %c5_26 = arith.constant 5 : index
    %c0_27 = arith.constant 0 : index
    %173 = vector.load %arg11[%c5_26, %c0_27] : memref<16x64xf32, #tpu.memory_space<vmem>>, vector<1x64xf32>
    %174 = vector.shape_cast %173 : vector<1x64xf32> to vector<64xf32>
    %175 = vector.shape_cast %148 : vector<64xf32> to vector<1x64xf32>
    tpu.vector_store %arg11[%c5_26, %c0_27], %175 {strides = array<i32>} : memref<16x64xf32, #tpu.memory_space<vmem>>, vector<1x64xf32>,
    %c6_28 = arith.constant 6 : index
    %c0_29 = arith.constant 0 : index
    %176 = vector.load %arg11[%c6_28, %c0_29] : memref<16x64xf32, #tpu.memory_space<vmem>>, vector<1x64xf32>
    %177 = vector.shape_cast %176 : vector<1x64xf32> to vector<64xf32>
    %178 = vector.shape_cast %149 : vector<64xf32> to vector<1x64xf32>
    tpu.vector_store %arg11[%c6_28, %c0_29], %178 {strides = array<i32>} : memref<16x64xf32, #tpu.memory_space<vmem>>, vector<1x64xf32>,
    %c7_30 = arith.constant 7 : index
    %c0_31 = arith.constant 0 : index
    %179 = vector.load %arg11[%c7_30, %c0_31] : memref<16x64xf32, #tpu.memory_space<vmem>>, vector<1x64xf32>
    %180 = vector.shape_cast %179 : vector<1x64xf32> to vector<64xf32>
    %181 = vector.shape_cast %150 : vector<64xf32> to vector<1x64xf32>
    tpu.vector_store %arg11[%c7_30, %c0_31], %181 {strides = array<i32>} : memref<16x64xf32, #tpu.memory_space<vmem>>, vector<1x64xf32>,
    %c8_32 = arith.constant 8 : index
    %c0_33 = arith.constant 0 : index
    %182 = vector.load %arg11[%c8_32, %c0_33] : memref<16x64xf32, #tpu.memory_space<vmem>>, vector<1x64xf32>
    %183 = vector.shape_cast %182 : vector<1x64xf32> to vector<64xf32>
    %184 = vector.shape_cast %151 : vector<64xf32> to vector<1x64xf32>
    tpu.vector_store %arg11[%c8_32, %c0_33], %184 {strides = array<i32>} : memref<16x64xf32, #tpu.memory_space<vmem>>, vector<1x64xf32>,
    %c9_34 = arith.constant 9 : index
    %c0_35 = arith.constant 0 : index
    %185 = vector.load %arg11[%c9_34, %c0_35] : memref<16x64xf32, #tpu.memory_space<vmem>>, vector<1x64xf32>
    %186 = vector.shape_cast %185 : vector<1x64xf32> to vector<64xf32>
    %187 = vector.shape_cast %152 : vector<64xf32> to vector<1x64xf32>
    tpu.vector_store %arg11[%c9_34, %c0_35], %187 {strides = array<i32>} : memref<16x64xf32, #tpu.memory_space<vmem>>, vector<1x64xf32>,
    %c10_36 = arith.constant 10 : index
    %c0_37 = arith.constant 0 : index
    %188 = vector.load %arg11[%c10_36, %c0_37] : memref<16x64xf32, #tpu.memory_space<vmem>>, vector<1x64xf32>
    %189 = vector.shape_cast %188 : vector<1x64xf32> to vector<64xf32>
    %190 = vector.shape_cast %153 : vector<64xf32> to vector<1x64xf32>
    tpu.vector_store %arg11[%c10_36, %c0_37], %190 {strides = array<i32>} : memref<16x64xf32, #tpu.memory_space<vmem>>, vector<1x64xf32>,
    %c11_38 = arith.constant 11 : index
    %c0_39 = arith.constant 0 : index
    %191 = vector.load %arg11[%c11_38, %c0_39] : memref<16x64xf32, #tpu.memory_space<vmem>>, vector<1x64xf32>
    %192 = vector.shape_cast %191 : vector<1x64xf32> to vector<64xf32>
    %193 = vector.shape_cast %154 : vector<64xf32> to vector<1x64xf32>
    tpu.vector_store %arg11[%c11_38, %c0_39], %193 {strides = array<i32>} : memref<16x64xf32, #tpu.memory_space<vmem>>, vector<1x64xf32>,
    %c12_40 = arith.constant 12 : index
    %c0_41 = arith.constant 0 : index
    %194 = vector.load %arg11[%c12_40, %c0_41] : memref<16x64xf32, #tpu.memory_space<vmem>>, vector<1x64xf32>
    %195 = vector.shape_cast %194 : vector<1x64xf32> to vector<64xf32>
    %196 = vector.shape_cast %155 : vector<64xf32> to vector<1x64xf32>
    tpu.vector_store %arg11[%c12_40, %c0_41], %196 {strides = array<i32>} : memref<16x64xf32, #tpu.memory_space<vmem>>, vector<1x64xf32>,
    %c13_42 = arith.constant 13 : index
    %c0_43 = arith.constant 0 : index
    %197 = vector.load %arg11[%c13_42, %c0_43] : memref<16x64xf32, #tpu.memory_space<vmem>>, vector<1x64xf32>
    %198 = vector.shape_cast %197 : vector<1x64xf32> to vector<64xf32>
    %199 = vector.shape_cast %156 : vector<64xf32> to vector<1x64xf32>
    tpu.vector_store %arg11[%c13_42, %c0_43], %199 {strides = array<i32>} : memref<16x64xf32, #tpu.memory_space<vmem>>, vector<1x64xf32>,
    %c14_44 = arith.constant 14 : index
    %c0_45 = arith.constant 0 : index
    %200 = vector.load %arg11[%c14_44, %c0_45] : memref<16x64xf32, #tpu.memory_space<vmem>>, vector<1x64xf32>
    %201 = vector.shape_cast %200 : vector<1x64xf32> to vector<64xf32>
    %202 = vector.shape_cast %157 : vector<64xf32> to vector<1x64xf32>
    tpu.vector_store %arg11[%c14_44, %c0_45], %202 {strides = array<i32>} : memref<16x64xf32, #tpu.memory_space<vmem>>, vector<1x64xf32>,
    %c15_46 = arith.constant 15 : index
    %c0_47 = arith.constant 0 : index
    %203 = vector.load %arg11[%c15_46, %c0_47] : memref<16x64xf32, #tpu.memory_space<vmem>>, vector<1x64xf32>
    %204 = vector.shape_cast %203 : vector<1x64xf32> to vector<64xf32>
    %205 = vector.shape_cast %135 : vector<64xf32> to vector<1x64xf32>
    tpu.vector_store %arg11[%c15_46, %c0_47], %205 {strides = array<i32>} : memref<16x64xf32, #tpu.memory_space<vmem>>, vector<1x64xf32>,
    %c0_48 = arith.constant 0 : index
    %c0_49 = arith.constant 0 : index
    %206 = vector.load %arg11[%c0_48, %c0_49] : memref<16x64xf32, #tpu.memory_space<vmem>>, vector<16x64xf32>
    %c0_50 = arith.constant 0 : index
    %207 = memref.load %arg8[%c0_50] : memref<1xf32, #tpu.memory_space<smem>>
    %c0_51 = arith.constant 0 : index
    %208 = memref.load %arg9[%c0_51] : memref<1xf32, #tpu.memory_space<smem>>
    %c0_52 = arith.constant 0 : index
    %c0_53 = arith.constant 0 : index
    %209 = vector.load %arg2[%c0_52, %c0_53] : memref<50x16xf32, #tpu.memory_space<vmem>>, vector<50x16xf32>
    %cst = arith.constant dense<0.000000e+00> : vector<50x64xf32>
    %210 = tpu.matmul %209, %206, %cst {dimension_numbers = #tpu.dot_dimension_numbers<[1], [0], [0], [1], [0, 0, 1, 1], [], []>} : vector<50x16xf32>, vector<16x64xf32>, vector<50x64xf32> -> vector<50x64xf32>
    %c0_54 = arith.constant 0 : index
    %c0_55 = arith.constant 0 : index
    %211 = vector.load %arg3[%c0_54, %c0_55] : memref<50x1xf32, #tpu.memory_space<vmem>>, vector<50x1xf32>
    %212 = vector.broadcast %211 : vector<50x1xf32> to vector<50x64xf32>
    %213 = arith.addf %210, %212 : vector<50x64xf32>
    %cst_56 = arith.constant 0.000000e+00 : f32
    %214 = vector.broadcast %cst_56 : f32 to vector<50x64xf32>
    %215 = arith.cmpf ogt, %213, %214 : vector<50x64xf32>
    %216 = vector.broadcast %207 : f32 to vector<50x64xf32>
    %217 = arith.mulf %213, %216 : vector<50x64xf32>
    %218 = arith.select %215, %213, %217 : vector<50x64xi1>, vector<50x64xf32>
    %c0_57 = arith.constant 0 : index
    %c0_58 = arith.constant 0 : index
    %219 = vector.load %arg4[%c0_57, %c0_58] : memref<50x50xf32, #tpu.memory_space<vmem>>, vector<50x50xf32>
    %cst_59 = arith.constant dense<0.000000e+00> : vector<50x64xf32>
    %220 = tpu.matmul %219, %218, %cst_59 {dimension_numbers = #tpu.dot_dimension_numbers<[1], [0], [0], [1], [0, 0, 1, 1], [], []>} : vector<50x50xf32>, vector<50x64xf32>, vector<50x64xf32> -> vector<50x64xf32>
    %c0_60 = arith.constant 0 : index
    %c0_61 = arith.constant 0 : index
    %221 = vector.load %arg5[%c0_60, %c0_61] : memref<50x1xf32, #tpu.memory_space<vmem>>, vector<50x1xf32>
    %222 = vector.broadcast %221 : vector<50x1xf32> to vector<50x64xf32>
    %223 = arith.addf %220, %222 : vector<50x64xf32>
    %cst_62 = arith.constant 0.000000e+00 : f32
    %224 = vector.broadcast %cst_62 : f32 to vector<50x64xf32>
    %225 = arith.cmpf ogt, %223, %224 : vector<50x64xf32>
    %226 = vector.broadcast %208 : f32 to vector<50x64xf32>
    %227 = arith.mulf %223, %226 : vector<50x64xf32>
    %228 = arith.select %225, %223, %227 : vector<50x64xi1>, vector<50x64xf32>
    %c0_63 = arith.constant 0 : index
    %c0_64 = arith.constant 0 : index
    %229 = vector.load %arg6[%c0_63, %c0_64] : memref<8x50xf32, #tpu.memory_space<vmem>>, vector<8x50xf32>
    %cst_65 = arith.constant dense<0.000000e+00> : vector<8x64xf32>
    %230 = tpu.matmul %229, %228, %cst_65 {dimension_numbers = #tpu.dot_dimension_numbers<[1], [0], [0], [1], [0, 0, 1, 1], [], []>} : vector<8x50xf32>, vector<50x64xf32>, vector<8x64xf32> -> vector<8x64xf32>
    %c0_66 = arith.constant 0 : index
    %c0_67 = arith.constant 0 : index
    %231 = vector.load %arg7[%c0_66, %c0_67] : memref<8x1xf32, #tpu.memory_space<vmem>>, vector<8x1xf32>
    %232 = vector.broadcast %231 : vector<8x1xf32> to vector<8x64xf32>
    %233 = arith.addf %230, %232 : vector<8x64xf32>
    %c0_68 = arith.constant 0 : index
    %c0_69 = arith.constant 0 : index
    %234 = vector.load %arg10[%c0_68, %c0_69] : memref<8x64xf32, #tpu.memory_space<vmem>>, vector<8x64xf32>
    tpu.vector_store %arg10[%c0_68, %c0_69], %233 {strides = array<i32>} : memref<8x64xf32, #tpu.memory_space<vmem>>, vector<8x64xf32>,
    return
  }
  func.func @transform_0(%arg0: i32) -> (i32, i32) {
    %c0_i32 = arith.constant 0 : i32
    %c0_i32_0 = arith.constant 0 : i32
    return %c0_i32, %arg0 : i32, i32
  }
  func.func @transform_1(%arg0: i32) -> (i32, i32) {
    %c0_i32 = arith.constant 0 : i32
    %c0_i32_0 = arith.constant 0 : i32
    %c0_i32_1 = arith.constant 0 : i32
    return %c0_i32, %c0_i32_0 : i32, i32
  }
  func.func @transform_2(%arg0: i32) -> (i32, i32) {
    %c0_i32 = arith.constant 0 : i32
    %c0_i32_0 = arith.constant 0 : i32
    %c0_i32_1 = arith.constant 0 : i32
    return %c0_i32, %c0_i32_0 : i32, i32
  }
  func.func @transform_3(%arg0: i32) -> (i32, i32) {
    %c0_i32 = arith.constant 0 : i32
    %c0_i32_0 = arith.constant 0 : i32
    %c0_i32_1 = arith.constant 0 : i32
    return %c0_i32, %c0_i32_0 : i32, i32
  }
  func.func @transform_4(%arg0: i32) -> (i32, i32) {
    %c0_i32 = arith.constant 0 : i32
    %c0_i32_0 = arith.constant 0 : i32
    %c0_i32_1 = arith.constant 0 : i32
    return %c0_i32, %c0_i32_0 : i32, i32
  }
  func.func @transform_5(%arg0: i32) -> (i32, i32) {
    %c0_i32 = arith.constant 0 : i32
    %c0_i32_0 = arith.constant 0 : i32
    %c0_i32_1 = arith.constant 0 : i32
    return %c0_i32, %c0_i32_0 : i32, i32
  }
  func.func @transform_6(%arg0: i32) -> (i32, i32) {
    %c0_i32 = arith.constant 0 : i32
    %c0_i32_0 = arith.constant 0 : i32
    %c0_i32_1 = arith.constant 0 : i32
    return %c0_i32, %c0_i32_0 : i32, i32
  }
  func.func @transform_7(%arg0: i32) -> i32 {
    %c0_i32 = arith.constant 0 : i32
    %c0_i32_0 = arith.constant 0 : i32
    return %c0_i32 : i32
  }
  func.func @transform_8(%arg0: i32) -> i32 {
    %c0_i32 = arith.constant 0 : i32
    %c0_i32_0 = arith.constant 0 : i32
    return %c0_i32 : i32
  }
  func.func @transform_9(%arg0: i32) -> (i32, i32) {
    %c0_i32 = arith.constant 0 : i32
    %c0_i32_0 = arith.constant 0 : i32
    return %c0_i32, %arg0 : i32, i32
  }
}

</mosaic_0001>

<llo_original>
// kernel: tpu_custom_call.1
$region0: #{tpu_custom_call.1}
  #allocation0 [shape = 'u32[]', space=smem, size = 0x4, offset = 0x4, fixed_abs, tag = 'smem constant byte address 0x4 - core index']
  #allocation1 [shape = 'u32[144,128]{1,0:T(1,128)}', space=vmem, size = 0x12000, scoped, tag = 'internal scratch']
  #allocation2 [shape = 'f32[16,64]{1,0:T(8,128)}', space=vmem, size = 0x2000, scoped, tag = 'scratch operand']
  #allocation3 [shape = 'f32[1]{0:T(128)S(6)}', space=smem, size = 0x200, scoped, tag = 'scoped memory for tpu_custom_call.1']
  #allocation4 [shape = 'f32[1]{0:T(128)S(6)}', space=smem, size = 0x200, scoped, tag = 'scoped memory for tpu_custom_call.1']
  %s0 = inlined_call_operand.vmem [shape: f32[16,64], index: 0, kind: input, shape index: {}]
  %s1 = inlined_call_operand.vmem [shape: f32[50,16], index: 1, kind: input, shape index: {}]
  %s2 = inlined_call_operand.vmem [shape: f32[50,1], index: 2, kind: input, shape index: {}]
  %s3 = inlined_call_operand.vmem [shape: f32[50,50], index: 3, kind: input, shape index: {}]
  %s4 = inlined_call_operand.vmem [shape: f32[50,1], index: 4, kind: input, shape index: {}]
  %s5 = inlined_call_operand.vmem [shape: f32[8,50], index: 5, kind: input, shape index: {}]
  %s6 = inlined_call_operand.vmem [shape: f32[8,1], index: 6, kind: input, shape index: {}]
  %s7 = inlined_call_operand.<no memory space> [shape: f32[1], index: 7, kind: input, shape index: {}]
  %s8 = inlined_call_operand.<no memory space> [shape: f32[1], index: 8, kind: input, shape index: {}]
  %s9 = inlined_call_operand.hbm [shape: f32[8,64], index: 9, kind: output, shape index: {}]
  %s10 = sld [smem:[#allocation0]]
  $region46: #{tpu_custom_call.1} parent=0
    _
  %s12 = ssub.s32 1, %s10
  %s13 = scalar_select 0, %s12, %s10
  %14 = sst [smem:[#allocation3]] %s7
  %15 = sst [smem:[#allocation4]] %s8
  $region1: #{tpu_custom_call.1} parent=0
    #allocation5 [shape = 'u8[4096]{0}', space=vmem, size = 0x1000, scoped, tag = 'output window, operand 0, single buffered']
    #allocation6 [shape = 's32[1]{0}', space=sflag, size = 0x4, scoped, tag = 'scoped memory for tpu_custom_call.1']
    %16 = vsyncpa [#allocation6], 0
    // Predicated region
    $region2: #{tpu_custom_call.1} parent=1 // pred_check
      _
    $region3: #{tpu_custom_call.1} parent=1 // pred_check_branch
      %18 = sbr.rel (0) target = $region5
    $region4: #{tpu_custom_call.1} parent=1 // pred_region
      _
    $region5: #{tpu_custom_call.1} parent=1 // pred_fallthru
      _
    // Predicated region
    $region6: #{tpu_custom_call.1} parent=1 // pred_check
      _
    $region7: #{tpu_custom_call.1} parent=1 // pred_check_branch
      %20 = sbr.rel (0) target = $region9
    $region8: #{tpu_custom_call.1} parent=1 // pred_region
      _
    $region9: #{tpu_custom_call.1} parent=1 // pred_fallthru
      _
    // Predicated region
    $region10: #{tpu_custom_call.1} parent=1 // pred_check
      _
    $region11: #{tpu_custom_call.1} parent=1 // pred_check_branch
      %22 = sbr.rel (0) target = $region13
    $region12: #{tpu_custom_call.1} parent=1 // pred_region
      _
    $region13: #{tpu_custom_call.1} parent=1 // pred_fallthru
      _
    // Predicated region
    $region14: #{tpu_custom_call.1} parent=1 // pred_check
      _
    $region15: #{tpu_custom_call.1} parent=1 // pred_check_branch
      %24 = sbr.rel (0) target = $region17
    $region16: #{tpu_custom_call.1} parent=1 // pred_region
      _
    $region17: #{tpu_custom_call.1} parent=1 // pred_fallthru
      _
    // Predicated region
    $region18: #{tpu_custom_call.1} parent=1 // pred_check
      _
    $region19: #{tpu_custom_call.1} parent=1 // pred_check_branch
      %26 = sbr.rel (0) target = $region21
    $region20: #{tpu_custom_call.1} parent=1 // pred_region
      _
    $region21: #{tpu_custom_call.1} parent=1 // pred_fallthru
      _
    // Predicated region
    $region22: #{tpu_custom_call.1} parent=1 // pred_check
      _
    $region23: #{tpu_custom_call.1} parent=1 // pred_check_branch
      %28 = sbr.rel (0) target = $region25
    $region24: #{tpu_custom_call.1} parent=1 // pred_region
      _
    $region25: #{tpu_custom_call.1} parent=1 // pred_fallthru
      _
    // Predicated region
    $region26: #{tpu_custom_call.1} parent=1 // pred_check
      _
    $region27: #{tpu_custom_call.1} parent=1 // pred_check_branch
      %30 = sbr.rel (0) target = $region29
    $region28: #{tpu_custom_call.1} parent=1 // pred_region
      _
    $region29: #{tpu_custom_call.1} parent=1 // pred_fallthru
      _
    // Predicated region
    $region30: #{tpu_custom_call.1} parent=1 // pred_check
      _
    $region31: #{tpu_custom_call.1} parent=1 // pred_check_branch
      %32 = sbr.rel (0) target = $region33
    $region32: #{tpu_custom_call.1} parent=1 // pred_region
      _
    $region33: #{tpu_custom_call.1} parent=1 // pred_fallthru
      _
    // Predicated region
    $region34: #{tpu_custom_call.1} parent=1 // pred_check
      _
    $region35: #{tpu_custom_call.1} parent=1 // pred_check_branch
      %34 = sbr.rel (0) target = $region37
    $region36: #{tpu_custom_call.1} parent=1 // pred_region
      _
    $region37: #{tpu_custom_call.1} parent=1 // pred_fallthru
      _
    %v35 = vld [vmem:[%s0] sm:$0x1]
    %v36 = vld [vmem:[%s0 + $0x1] sm:$0x1]
    %v37 = vld [vmem:[%s0 + $0x2] sm:$0x1]
    %v38 = vld [vmem:[%s0 + $0x3] sm:$0x1]
    %v39 = vld [vmem:[%s0 + $0x4] sm:$0x1]
    %v40 = vld [vmem:[%s0 + $0x5] sm:$0x1]
    %v41 = vld [vmem:[%s0 + $0x6] sm:$0x1]
    %v42 = vld [vmem:[%s0 + $0x7] sm:$0x1]
    %v43 = vld [vmem:[%s0 + $0x8] sm:$0x1]
    %v44 = vld [vmem:[%s0 + $0x9] sm:$0x1]
    %v45 = vld [vmem:[%s0 + $0xa] sm:$0x1]
    %v46 = vld [vmem:[%s0 + $0xb] sm:$0x1]
    %v47 = vld [vmem:[%s0 + $0xc] sm:$0x1]
    %v48 = vld [vmem:[%s0 + $0xd] sm:$0x1]
    %v49 = vld [vmem:[%s0 + $0xe] sm:$0x1]
    %v50 = vld [vmem:[%s0 + $0xf] sm:$0x1]
    %v51 = vmin.f32 %v35, %v36
    %v52 = vmax.f32 %v35, %v36
    %v53 = vmin.f32 %v37, %v38
    %v54 = vmax.f32 %v37, %v38
    %v55 = vmin.f32 %v51, %v53
    %v56 = vmax.f32 %v51, %v53
    %v57 = vmin.f32 %v52, %v54
    %v58 = vmax.f32 %v52, %v54
    %v59 = vmin.f32 %v57, %v56
    %v60 = vmax.f32 %v57, %v56
    %v61 = vmin.f32 %v39, %v40
    %v62 = vmax.f32 %v39, %v40
    %v63 = vmin.f32 %v41, %v42
    %v64 = vmax.f32 %v41, %v42
    %v65 = vmin.f32 %v61, %v63
    %v66 = vmax.f32 %v61, %v63
    %v67 = vmin.f32 %v62, %v64
    %v68 = vmax.f32 %v62, %v64
    %v69 = vmin.f32 %v67, %v66
    %v70 = vmax.f32 %v67, %v66
    %v71 = vmin.f32 %v55, %v65
    %v72 = vmax.f32 %v55, %v65
    %v73 = vmin.f32 %v60, %v70
    %v74 = vmax.f32 %v60, %v70
    %v75 = vmin.f32 %v73, %v72
    %v76 = vmax.f32 %v73, %v72
    %v77 = vmin.f32 %v59, %v69
    %v78 = vmax.f32 %v59, %v69
    %v79 = vmin.f32 %v58, %v68
    %v80 = vmax.f32 %v58, %v68
    %v81 = vmin.f32 %v79, %v78
    %v82 = vmax.f32 %v79, %v78
    %v83 = vmin.f32 %v77, %v75
    %v84 = vmax.f32 %v77, %v75
    %v85 = vmin.f32 %v81, %v76
    %v86 = vmax.f32 %v81, %v76
    %v87 = vmin.f32 %v82, %v74
    %v88 = vmax.f32 %v82, %v74
    %v89 = vmin.f32 %v43, %v44
    %v90 = vmax.f32 %v43, %v44
    %v91 = vmin.f32 %v45, %v46
    %v92 = vmax.f32 %v45, %v46
    %v93 = vmin.f32 %v89, %v91
    %v94 = vmax.f32 %v89, %v91
    %v95 = vmin.f32 %v90, %v92
    %v96 = vmax.f32 %v90, %v92
    %v97 = vmin.f32 %v95, %v94
    %v98 = vmax.f32 %v95, %v94
    %v99 = vmin.f32 %v47, %v48
    %v100 = vmax.f32 %v47, %v48
    %v101 = vmin.f32 %v49, %v50
    %v102 = vmax.f32 %v49, %v50
    %v103 = vmin.f32 %v99, %v101
    %v104 = vmax.f32 %v99, %v101
    %v105 = vmin.f32 %v100, %v102
    %v106 = vmax.f32 %v100, %v102
    %v107 = vmin.f32 %v105, %v104
    %v108 = vmax.f32 %v105, %v104
    %v109 = vmin.f32 %v93, %v103
    %v110 = vmax.f32 %v93, %v103
    %v111 = vmin.f32 %v98, %v108
    %v112 = vmax.f32 %v98, %v108
    %v113 = vmin.f32 %v111, %v110
    %v114 = vmax.f32 %v111, %v110
    %v115 = vmin.f32 %v97, %v107
    %v116 = vmax.f32 %v97, %v107
    %v117 = vmin.f32 %v96, %v106
    %v118 = vmax.f32 %v96, %v106
    %v119 = vmin.f32 %v117, %v116
    %v120 = vmax.f32 %v117, %v116
    %v121 = vmin.f32 %v115, %v113
    %v122 = vmax.f32 %v115, %v113
    %v123 = vmin.f32 %v119, %v114
    %v124 = vmax.f32 %v119, %v114
    %v125 = vmin.f32 %v120, %v112
    %v126 = vmax.f32 %v120, %v112
    %v127 = vmin.f32 %v71, %v109
    %v128 = vmax.f32 %v71, %v109
    %v129 = vmin.f32 %v86, %v124
    %v130 = vmax.f32 %v86, %v124
    %v131 = vmin.f32 %v129, %v128
    %v132 = vmax.f32 %v129, %v128
    %v133 = vmin.f32 %v84, %v122
    %v134 = vmax.f32 %v84, %v122
    %v135 = vmin.f32 %v88, %v126
    %v136 = vmax.f32 %v88, %v126
    %v137 = vmin.f32 %v135, %v134
    %v138 = vmax.f32 %v135, %v134
    %v139 = vmin.f32 %v133, %v131
    %v140 = vmax.f32 %v133, %v131
    %v141 = vmin.f32 %v137, %v132
    %v142 = vmax.f32 %v137, %v132
    %v143 = vmin.f32 %v138, %v130
    %v144 = vmax.f32 %v138, %v130
    %v145 = vmin.f32 %v83, %v121
    %v146 = vmax.f32 %v83, %v121
    %v147 = vmin.f32 %v87, %v125
    %v148 = vmax.f32 %v87, %v125
    %v149 = vmin.f32 %v147, %v146
    %v150 = vmax.f32 %v147, %v146
    %v151 = vmin.f32 %v85, %v123
    %v152 = vmax.f32 %v85, %v123
    %v153 = vmin.f32 %v80, %v118
    %v154 = vmax.f32 %v80, %v118
    %v155 = vmin.f32 %v153, %v152
    %v156 = vmax.f32 %v153, %v152
    %v157 = vmin.f32 %v151, %v149
    %v158 = vmax.f32 %v151, %v149
    %v159 = vmin.f32 %v155, %v150
    %v160 = vmax.f32 %v155, %v150
    %v161 = vmin.f32 %v156, %v148
    %v162 = vmax.f32 %v156, %v148
    %v163 = vmin.f32 %v145, %v139
    %v164 = vmax.f32 %v145, %v139
    %v165 = vmin.f32 %v157, %v140
    %v166 = vmax.f32 %v157, %v140
    %v167 = vmin.f32 %v158, %v141
    %v168 = vmax.f32 %v158, %v141
    %v169 = vmin.f32 %v159, %v142
    %v170 = vmax.f32 %v159, %v142
    %v171 = vmin.f32 %v160, %v143
    %v172 = vmax.f32 %v160, %v143
    %v173 = vmin.f32 %v161, %v144
    %v174 = vmax.f32 %v161, %v144
    %v175 = vmin.f32 %v162, %v136
    %v176 = vmax.f32 %v162, %v136
    %vm177 = vcmask 516096
    %178 = vst.msk [vmem:[#allocation2] sm:$0x1] %vm177, %v127
    %179 = vst.msk [vmem:[#allocation2 + $0x1] sm:$0x1] %vm177, %v163
    %180 = vst.msk [vmem:[#allocation2 + $0x2] sm:$0x1] %vm177, %v164
    %181 = vst.msk [vmem:[#allocation2 + $0x3] sm:$0x1] %vm177, %v165
    %182 = vst.msk [vmem:[#allocation2 + $0x4] sm:$0x1] %vm177, %v166
    %183 = vst.msk [vmem:[#allocation2 + $0x5] sm:$0x1] %vm177, %v167
    %184 = vst.msk [vmem:[#allocation2 + $0x6] sm:$0x1] %vm177, %v168
    %185 = vst.msk [vmem:[#allocation2 + $0x7] sm:$0x1] %vm177, %v169
    %186 = vst.msk [vmem:[#allocation2 + $0x8] sm:$0x1] %vm177, %v170
    %187 = vst.msk [vmem:[#allocation2 + $0x9] sm:$0x1] %vm177, %v171
    %188 = vst.msk [vmem:[#allocation2 + $0xa] sm:$0x1] %vm177, %v172
    %189 = vst.msk [vmem:[#allocation2 + $0xb] sm:$0x1] %vm177, %v173
    %190 = vst.msk [vmem:[#allocation2 + $0xc] sm:$0x1] %vm177, %v174
    %191 = vst.msk [vmem:[#allocation2 + $0xd] sm:$0x1] %vm177, %v175
    %192 = vst.msk [vmem:[#allocation2 + $0xe] sm:$0x1] %vm177, %v176
    %193 = vst.msk [vmem:[#allocation2 + $0xf] sm:$0x1] %vm177, %v154
    %v194 = vld [vmem:[#allocation2] sm:$0xff]
    %v195 = vld [vmem:[#allocation2 + $0x8] sm:$0xff]
    %s196 = sld [smem:[#allocation3]]
    %s197 = sld [smem:[#allocation4]]
    %v198 = vld [vmem:[%s1] sm:$0xff]
    %v199 = vld [vmem:[%s1 + $0x8] sm:$0xff]
    %v200 = vld [vmem:[%s1 + $0x10] sm:$0xff]
    %v201 = vld [vmem:[%s1 + $0x18] sm:$0xff]
    %v202 = vld [vmem:[%s1 + $0x20] sm:$0xff]
    %v203 = vld [vmem:[%s1 + $0x28] sm:$0xff]
    %v204 = vld [vmem:[%s1 + $0x30] sm:$0x3]
    %v205 = vld [vmem:[%s2] sm:$0xff]
    %v206 = vld [vmem:[%s2 + $0x8] sm:$0xff]
    %v207 = vld [vmem:[%s2 + $0x10] sm:$0xff]
    %v208 = vld [vmem:[%s2 + $0x18] sm:$0xff]
    %v209 = vld [vmem:[%s2 + $0x20] sm:$0xff]
    %v210 = vld [vmem:[%s2 + $0x28] sm:$0xff]
    %v211 = vld [vmem:[%s2 + $0x30] sm:$0x3]
    %213 = vset.pattern.permute.xlu0 0
    %214 = vperm.xlu0 %213, %v205
    %v215 = vpop.permute.xlu0 %214
    %218 = vset.pattern.permute.xlu0 0
    %219 = vperm.xlu0 %218, %v206
    %v220 = vpop.permute.xlu0 %219
    %223 = vset.pattern.permute.xlu0 0
    %224 = vperm.xlu0 %223, %v207
    %v225 = vpop.permute.xlu0 %224
    %228 = vset.pattern.permute.xlu0 0
    %229 = vperm.xlu0 %228, %v208
    %v230 = vpop.permute.xlu0 %229
    %233 = vset.pattern.permute.xlu0 0
    %234 = vperm.xlu0 %233, %v209
    %v235 = vpop.permute.xlu0 %234
    %238 = vset.pattern.permute.xlu0 0
    %239 = vperm.xlu0 %238, %v210
    %v240 = vpop.permute.xlu0 %239
    %243 = vset.pattern.permute.xlu0 0
    %244 = vperm.xlu0 %243, %v211
    %v245 = vpop.permute.xlu0 %244
    %vm247 = vcmask 130048
    %v249 = vsel %vm247, %v198, 0
    %v252 = vsel %vm247, %v199, 0
    %v255 = vsel %vm247, %v200, 0
    %v258 = vsel %vm247, %v201, 0
    %v261 = vsel %vm247, %v202, 0
    %v264 = vsel %vm247, %v203, 0
    %v267 = vsel %vm247, %v204, 0
    %269 = vmatprep.subr.mxu0 0.0
    %270 = vmatpush1.msra.mxu0 %v194
    %271 = vmatprep.subr.mxu0 0.0
    %272 = vmatpush1.msra.mxu0 %v195
    %273 = vmatprep.subr.mxu0 0.0
    %274 = vmatpush1.msra.mxu0 0.0
    %275 = vmatprep.subr.mxu0 0.0
    %276 = vmatpush1.msra.mxu0 0.0
    %277 = vmatprep.subr.mxu0 0.0
    %278 = vmatpush1.msra.mxu0 0.0
    %279 = vmatprep.subr.mxu0 0.0
    %280 = vmatpush1.msra.mxu0 0.0
    %281 = vmatprep.subr.mxu0 0.0
    %282 = vmatpush1.msra.mxu0 0.0
    %283 = vmatprep.subr.mxu0 0.0
    %284 = vmatpush1.msra.mxu0 0.0
    %285 = vmatprep.subr.mxu0 0.0
    %286 = vmatpush1.msra.mxu0 0.0
    %287 = vmatprep.subr.mxu0 0.0
    %288 = vmatpush1.msra.mxu0 0.0
    %289 = vmatprep.subr.mxu0 0.0
    %290 = vmatpush1.msra.mxu0 0.0
    %291 = vmatprep.subr.mxu0 0.0
    %292 = vmatpush1.msra.mxu0 0.0
    %293 = vmatprep.subr.mxu0 0.0
    %294 = vmatpush1.msra.mxu0 0.0
    %295 = vmatprep.subr.mxu0 0.0
    %296 = vmatpush1.msra.mxu0 0.0
    %297 = vmatprep.subr.mxu0 0.0
    %298 = vmatpush1.msra.mxu0 0.0
    %299 = vmatprep.subr.mxu0 0.0
    %300 = vmatpush1.msra.mxu0 0.0
    %301 = vmatprep.subr.mxu0 0.0
    %302 = vmatpush1.msra.mxu0 0.0
    %303 = vmatprep.subr.mxu0 0.0
    %304 = vmatpush1.msra.mxu0 0.0
    %305 = vmatprep.subr.mxu0 0.0
    %306 = vmatpush1.msra.mxu0 0.0
    %307 = vmatprep.subr.mxu0 0.0
    %308 = vmatpush1.msra.mxu0 0.0
    %309 = vmatprep.subr.mxu0 0.0
    %310 = vmatpush1.msra.mxu0 0.0
    %311 = vmatprep.subr.mxu0 0.0
    %312 = vmatpush1.msra.mxu0 0.0
    %313 = vmatprep.subr.mxu0 0.0
    %314 = vmatpush1.msra.mxu0 0.0
    %315 = vmatprep.subr.mxu0 0.0
    %316 = vmatpush1.msra.mxu0 0.0
    %317 = vmatprep.subr.mxu0 0.0
    %318 = vmatpush1.msra.mxu0 0.0
    %319 = vmatprep.subr.mxu0 0.0
    %320 = vmatpush1.msra.mxu0 0.0
    %321 = vmatprep.subr.mxu0 0.0
    %322 = vmatpush1.msra.mxu0 0.0
    %323 = vmatprep.subr.mxu0 0.0
    %324 = vmatpush1.msra.mxu0 0.0
    %325 = vmatprep.subr.mxu0 0.0
    %326 = vmatpush1.msra.mxu0 0.0
    %327 = vmatprep.subr.mxu0 0.0
    %328 = vmatpush1.msra.mxu0 0.0
    %329 = vmatprep.subr.mxu0 0.0
    %330 = vmatpush1.msra.mxu0 0.0
    %331 = vmatprep.subr.mxu0 0.0
    %332 = vmatpush1.msra.mxu0 0.0
    %333 = vmatprep.mubr.f32.mxu0 0.0
    %334 = vmatmul.mubr.f32.gmra.mrb[0].mxu0 %v249
    %v335 = vpop.f32.mrb[0].mxu0
    %v336 = vadd.f32 %v215, %v335
    %v337 = vpop.f32.mrb[0].mxu0
    %338 = vmatprep.mubr.f32.mxu0 0.0
    %339 = vmatmul.mubr.f32.gmra.mrb[0].mxu0 %v252
    %v340 = vpop.f32.mrb[0].mxu0
    %v341 = vadd.f32 %v220, %v340
    %v342 = vpop.f32.mrb[0].mxu0
    %343 = vmatprep.mubr.f32.mxu0 0.0
    %344 = vmatmul.mubr.f32.gmra.mrb[0].mxu0 %v255
    %v345 = vpop.f32.mrb[0].mxu0
    %v346 = vadd.f32 %v225, %v345
    %v347 = vpop.f32.mrb[0].mxu0
    %348 = vmatprep.mubr.f32.mxu0 0.0
    %349 = vmatmul.mubr.f32.gmra.mrb[0].mxu0 %v258
    %v350 = vpop.f32.mrb[0].mxu0
    %v351 = vadd.f32 %v230, %v350
    %v352 = vpop.f32.mrb[0].mxu0
    %353 = vmatprep.mubr.f32.mxu0 0.0
    %354 = vmatmul.mubr.f32.gmra.mrb[0].mxu0 %v261
    %v355 = vpop.f32.mrb[0].mxu0
    %v356 = vadd.f32 %v235, %v355
    %v357 = vpop.f32.mrb[0].mxu0
    %358 = vmatprep.mubr.f32.mxu0 0.0
    %359 = vmatmul.mubr.f32.gmra.mrb[0].mxu0 %v264
    %v360 = vpop.f32.mrb[0].mxu0
    %v361 = vadd.f32 %v240, %v360
    %v362 = vpop.f32.mrb[0].mxu0
    %363 = vmatprep.mubr.f32.mxu0 0.0
    %364 = vmatmul.mubr.f32.gmra.mrb[0].mxu0 %v267
    %v365 = vpop.f32.mrb[0].mxu0
    %v366 = vadd.f32 %v245, %v365
    %v367 = vpop.f32.mrb[0].mxu0
    %368 = vdwg.mxu0
    %vm369 = vcmp.gt.f32.partialorder %v336, 0.0
    %vm370 = vcmp.gt.f32.partialorder %v341, 0.0
    %vm371 = vcmp.gt.f32.partialorder %v346, 0.0
    %vm372 = vcmp.gt.f32.partialorder %v351, 0.0
    %vm373 = vcmp.gt.f32.partialorder %v356, 0.0
    %vm374 = vcmp.gt.f32.partialorder %v361, 0.0
    %vm375 = vcmp.gt.f32.partialorder %v366, 0.0
    %v376 = vstv %s196
    %v377 = vmul.f32 %v336, %v376
    %v378 = vmul.f32 %v341, %v376
    %v379 = vmul.f32 %v346, %v376
    %v380 = vmul.f32 %v351, %v376
    %v381 = vmul.f32 %v356, %v376
    %v382 = vmul.f32 %v361, %v376
    %v383 = vmul.f32 %v366, %v376
    %v384 = vsel %vm369, %v336, %v377
    %v385 = vsel %vm370, %v341, %v378
    %v386 = vsel %vm371, %v346, %v379
    %v387 = vsel %vm372, %v351, %v380
    %v388 = vsel %vm373, %v356, %v381
    %v389 = vsel %vm374, %v361, %v382
    %v390 = vsel %vm375, %v366, %v383
    %v391 = vld [vmem:[%s3] sm:$0xff]
    %v392 = vld [vmem:[%s3 + $0x8] sm:$0xff]
    %v393 = vld [vmem:[%s3 + $0x10] sm:$0xff]
    %v394 = vld [vmem:[%s3 + $0x18] sm:$0xff]
    %v395 = vld [vmem:[%s3 + $0x20] sm:$0xff]
    %v396 = vld [vmem:[%s3 + $0x28] sm:$0xff]
    %v397 = vld [vmem:[%s3 + $0x30] sm:$0x3]
    %v398 = vld [vmem:[%s4] sm:$0xff]
    %v399 = vld [vmem:[%s4 + $0x8] sm:$0xff]
    %v400 = vld [vmem:[%s4 + $0x10] sm:$0xff]
    %v401 = vld [vmem:[%s4 + $0x18] sm:$0xff]
    %v402 = vld [vmem:[%s4 + $0x20] sm:$0xff]
    %v403 = vld [vmem:[%s4 + $0x28] sm:$0xff]
    %v404 = vld [vmem:[%s4 + $0x30] sm:$0x3]
    %406 = vset.pattern.permute.xlu0 0
    %407 = vperm.xlu0 %406, %v398
    %v408 = vpop.permute.xlu0 %407
    %411 = vset.pattern.permute.xlu0 0
    %412 = vperm.xlu0 %411, %v399
    %v413 = vpop.permute.xlu0 %412
    %416 = vset.pattern.permute.xlu0 0
    %417 = vperm.xlu0 %416, %v400
    %v418 = vpop.permute.xlu0 %417
    %421 = vset.pattern.permute.xlu0 0
    %422 = vperm.xlu0 %421, %v401
    %v423 = vpop.permute.xlu0 %422
    %426 = vset.pattern.permute.xlu0 0
    %427 = vperm.xlu0 %426, %v402
    %v428 = vpop.permute.xlu0 %427
    %431 = vset.pattern.permute.xlu0 0
    %432 = vperm.xlu0 %431, %v403
    %v433 = vpop.permute.xlu0 %432
    %436 = vset.pattern.permute.xlu0 0
    %437 = vperm.xlu0 %436, %v404
    %v438 = vpop.permute.xlu0 %437
    %vm440 = vcmask 408576
    %v442 = vsel %vm440, %v391, 0
    %v445 = vsel %vm440, %v392, 0
    %v448 = vsel %vm440, %v393, 0
    %v451 = vsel %vm440, %v394, 0
    %v454 = vsel %vm440, %v395, 0
    %v457 = vsel %vm440, %v396, 0
    %v460 = vsel %vm440, %v397, 0
    %vm462 = vcmask 1041408
    %v464 = vsel %vm462, %v390, 0
    %466 = vmatprep.subr.mxu0 0.0
    %467 = vmatpush1.msra.mxu0 %v384
    %468 = vmatprep.subr.mxu0 0.0
    %469 = vmatpush1.msra.mxu0 %v385
    %470 = vmatprep.subr.mxu0 0.0
    %471 = vmatpush1.msra.mxu0 %v386
    %472 = vmatprep.subr.mxu0 0.0
    %473 = vmatpush1.msra.mxu0 %v387
    %474 = vmatprep.subr.mxu0 0.0
    %475 = vmatpush1.msra.mxu0 %v388
    %476 = vmatprep.subr.mxu0 0.0
    %477 = vmatpush1.msra.mxu0 %v389
    %478 = vmatprep.subr.mxu0 0.0
    %479 = vmatpush1.msra.mxu0 %v464
    %480 = vmatprep.subr.mxu0 0.0
    %481 = vmatpush1.msra.mxu0 0.0
    %482 = vmatprep.subr.mxu0 0.0
    %483 = vmatpush1.msra.mxu0 0.0
    %484 = vmatprep.subr.mxu0 0.0
    %485 = vmatpush1.msra.mxu0 0.0
    %486 = vmatprep.subr.mxu0 0.0
    %487 = vmatpush1.msra.mxu0 0.0
    %488 = vmatprep.subr.mxu0 0.0
    %489 = vmatpush1.msra.mxu0 0.0
    %490 = vmatprep.subr.mxu0 0.0
    %491 = vmatpush1.msra.mxu0 0.0
    %492 = vmatprep.subr.mxu0 0.0
    %493 = vmatpush1.msra.mxu0 0.0
    %494 = vmatprep.subr.mxu0 0.0
    %495 = vmatpush1.msra.mxu0 0.0
    %496 = vmatprep.subr.mxu0 0.0
    %497 = vmatpush1.msra.mxu0 0.0
    %498 = vmatprep.subr.mxu0 0.0
    %499 = vmatpush1.msra.mxu0 0.0
    %500 = vmatprep.subr.mxu0 0.0
    %501 = vmatpush1.msra.mxu0 0.0
    %502 = vmatprep.subr.mxu0 0.0
    %503 = vmatpush1.msra.mxu0 0.0
    %504 = vmatprep.subr.mxu0 0.0
    %505 = vmatpush1.msra.mxu0 0.0
    %506 = vmatprep.subr.mxu0 0.0
    %507 = vmatpush1.msra.mxu0 0.0
    %508 = vmatprep.subr.mxu0 0.0
    %509 = vmatpush1.msra.mxu0 0.0
    %510 = vmatprep.subr.mxu0 0.0
    %511 = vmatpush1.msra.mxu0 0.0
    %512 = vmatprep.subr.mxu0 0.0
    %513 = vmatpush1.msra.mxu0 0.0
    %514 = vmatprep.subr.mxu0 0.0
    %515 = vmatpush1.msra.mxu0 0.0
    %516 = vmatprep.subr.mxu0 0.0
    %517 = vmatpush1.msra.mxu0 0.0
    %518 = vmatprep.subr.mxu0 0.0
    %519 = vmatpush1.msra.mxu0 0.0
    %520 = vmatprep.subr.mxu0 0.0
    %521 = vmatpush1.msra.mxu0 0.0
    %522 = vmatprep.subr.mxu0 0.0
    %523 = vmatpush1.msra.mxu0 0.0
    %524 = vmatprep.subr.mxu0 0.0
    %525 = vmatpush1.msra.mxu0 0.0
    %526 = vmatprep.subr.mxu0 0.0
    %527 = vmatpush1.msra.mxu0 0.0
    %528 = vmatprep.subr.mxu0 0.0
    %529 = vmatpush1.msra.mxu0 0.0
    %530 = vmatprep.mubr.f32.mxu0 0.0
    %531 = vmatmul.mubr.f32.gmra.mrb[0].mxu0 %v442
    %v532 = vpop.f32.mrb[0].mxu0
    %v533 = vadd.f32 %v408, %v532
    %v534 = vpop.f32.mrb[0].mxu0
    %535 = vmatprep.mubr.f32.mxu0 0.0
    %536 = vmatmul.mubr.f32.gmra.mrb[0].mxu0 %v445
    %v537 = vpop.f32.mrb[0].mxu0
    %v538 = vadd.f32 %v413, %v537
    %v539 = vpop.f32.mrb[0].mxu0
    %540 = vmatprep.mubr.f32.mxu0 0.0
    %541 = vmatmul.mubr.f32.gmra.mrb[0].mxu0 %v448
    %v542 = vpop.f32.mrb[0].mxu0
    %v543 = vadd.f32 %v418, %v542
    %v544 = vpop.f32.mrb[0].mxu0
    %545 = vmatprep.mubr.f32.mxu0 0.0
    %546 = vmatmul.mubr.f32.gmra.mrb[0].mxu0 %v451
    %v547 = vpop.f32.mrb[0].mxu0
    %v548 = vadd.f32 %v423, %v547
    %v549 = vpop.f32.mrb[0].mxu0
    %550 = vmatprep.mubr.f32.mxu0 0.0
    %551 = vmatmul.mubr.f32.gmra.mrb[0].mxu0 %v454
    %v552 = vpop.f32.mrb[0].mxu0
    %v553 = vadd.f32 %v428, %v552
    %v554 = vpop.f32.mrb[0].mxu0
    %555 = vmatprep.mubr.f32.mxu0 0.0
    %556 = vmatmul.mubr.f32.gmra.mrb[0].mxu0 %v457
    %v557 = vpop.f32.mrb[0].mxu0
    %v558 = vadd.f32 %v433, %v557
    %v559 = vpop.f32.mrb[0].mxu0
    %560 = vmatprep.mubr.f32.mxu0 0.0
    %561 = vmatmul.mubr.f32.gmra.mrb[0].mxu0 %v460
    %v562 = vpop.f32.mrb[0].mxu0
    %v563 = vadd.f32 %v438, %v562
    %v564 = vpop.f32.mrb[0].mxu0
    %565 = vdwg.mxu0
    %vm566 = vcmp.gt.f32.partialorder %v533, 0.0
    %vm567 = vcmp.gt.f32.partialorder %v538, 0.0
    %vm568 = vcmp.gt.f32.partialorder %v543, 0.0
    %vm569 = vcmp.gt.f32.partialorder %v548, 0.0
    %vm570 = vcmp.gt.f32.partialorder %v553, 0.0
    %vm571 = vcmp.gt.f32.partialorder %v558, 0.0
    %vm572 = vcmp.gt.f32.partialorder %v563, 0.0
    %v573 = vstv %s197
    %v574 = vmul.f32 %v533, %v573
    %v575 = vmul.f32 %v538, %v573
    %v576 = vmul.f32 %v543, %v573
    %v577 = vmul.f32 %v548, %v573
    %v578 = vmul.f32 %v553, %v573
    %v579 = vmul.f32 %v558, %v573
    %v580 = vmul.f32 %v563, %v573
    %v581 = vsel %vm566, %v533, %v574
    %v582 = vsel %vm567, %v538, %v575
    %v583 = vsel %vm568, %v543, %v576
    %v584 = vsel %vm569, %v548, %v577
    %v585 = vsel %vm570, %v553, %v578
    %v586 = vsel %vm571, %v558, %v579
    %v587 = vsel %vm572, %v563, %v580
    %v588 = vld [vmem:[%s5] sm:$0xff]
    %v589 = vld [vmem:[%s6] sm:$0xff]
    %591 = vset.pattern.permute.xlu0 0
    %592 = vperm.xlu0 %591, %v589
    %v593 = vpop.permute.xlu0 %592
    %v596 = vsel %vm440, %v588, 0
    %v599 = vsel %vm462, %v587, 0
    %601 = vmatprep.subr.mxu0 0.0
    %602 = vmatpush1.msra.mxu0 %v581
    %603 = vmatprep.subr.mxu0 0.0
    %604 = vmatpush1.msra.mxu0 %v582
    %605 = vmatprep.subr.mxu0 0.0
    %606 = vmatpush1.msra.mxu0 %v583
    %607 = vmatprep.subr.mxu0 0.0
    %608 = vmatpush1.msra.mxu0 %v584
    %609 = vmatprep.subr.mxu0 0.0
    %610 = vmatpush1.msra.mxu0 %v585
    %611 = vmatprep.subr.mxu0 0.0
    %612 = vmatpush1.msra.mxu0 %v586
    %613 = vmatprep.subr.mxu0 0.0
    %614 = vmatpush1.msra.mxu0 %v599
    %615 = vmatprep.subr.mxu0 0.0
    %616 = vmatpush1.msra.mxu0 0.0
    %617 = vmatprep.subr.mxu0 0.0
    %618 = vmatpush1.msra.mxu0 0.0
    %619 = vmatprep.subr.mxu0 0.0
    %620 = vmatpush1.msra.mxu0 0.0
    %621 = vmatprep.subr.mxu0 0.0
    %622 = vmatpush1.msra.mxu0 0.0
    %623 = vmatprep.subr.mxu0 0.0
    %624 = vmatpush1.msra.mxu0 0.0
    %625 = vmatprep.subr.mxu0 0.0
    %626 = vmatpush1.msra.mxu0 0.0
    %627 = vmatprep.subr.mxu0 0.0
    %628 = vmatpush1.msra.mxu0 0.0
    %629 = vmatprep.subr.mxu0 0.0
    %630 = vmatpush1.msra.mxu0 0.0
    %631 = vmatprep.subr.mxu0 0.0
    %632 = vmatpush1.msra.mxu0 0.0
    %633 = vmatprep.subr.mxu0 0.0
    %634 = vmatpush1.msra.mxu0 0.0
    %635 = vmatprep.subr.mxu0 0.0
    %636 = vmatpush1.msra.mxu0 0.0
    %637 = vmatprep.subr.mxu0 0.0
    %638 = vmatpush1.msra.mxu0 0.0
    %639 = vmatprep.subr.mxu0 0.0
    %640 = vmatpush1.msra.mxu0 0.0
    %641 = vmatprep.subr.mxu0 0.0
    %642 = vmatpush1.msra.mxu0 0.0
    %643 = vmatprep.subr.mxu0 0.0
    %644 = vmatpush1.msra.mxu0 0.0
    %645 = vmatprep.subr.mxu0 0.0
    %646 = vmatpush1.msra.mxu0 0.0
    %647 = vmatprep.subr.mxu0 0.0
    %648 = vmatpush1.msra.mxu0 0.0
    %649 = vmatprep.subr.mxu0 0.0
    %650 = vmatpush1.msra.mxu0 0.0
    %651 = vmatprep.subr.mxu0 0.0
    %652 = vmatpush1.msra.mxu0 0.0
    %653 = vmatprep.subr.mxu0 0.0
    %654 = vmatpush1.msra.mxu0 0.0
    %655 = vmatprep.subr.mxu0 0.0
    %656 = vmatpush1.msra.mxu0 0.0
    %657 = vmatprep.subr.mxu0 0.0
    %658 = vmatpush1.msra.mxu0 0.0
    %659 = vmatprep.subr.mxu0 0.0
    %660 = vmatpush1.msra.mxu0 0.0
    %661 = vmatprep.subr.mxu0 0.0
    %662 = vmatpush1.msra.mxu0 0.0
    %663 = vmatprep.subr.mxu0 0.0
    %664 = vmatpush1.msra.mxu0 0.0
    %665 = vmatprep.mubr.f32.mxu0 0.0
    %666 = vmatmul.mubr.f32.gmra.mrb[0].mxu0 %v596
    %v667 = vpop.f32.mrb[0].mxu0
    %v668 = vadd.f32 %v593, %v667
    %v669 = vpop.f32.mrb[0].mxu0
    %670 = vdwg.mxu0
    %vm671 = vcmask 523264
    %672 = vst.msk [vmem:[#allocation5] sm:$0xff] %vm671, %v668
    // Predicated region
    $region38: #{tpu_custom_call.1} parent=1 // pred_check
      _
    $region39: #{tpu_custom_call.1} parent=1 // pred_check_branch
      %674 = sbr.rel (0) target = $region41
    $region40: #{tpu_custom_call.1} parent=1 // pred_region
      %s676 = ssub.s32 128, 128
      %677 = vsyncadd [#allocation6], %s676
      %s679 = sshll.u32 [#allocation5], 4
      %s680 = int_to_ptr.vmem [resolvable:$true] %s679
      %682 = dma.vmem_to_hbm [thread:$0]  %s680, 128, %s9, [#allocation6]
    $region41: #{tpu_custom_call.1} parent=1 // pred_fallthru
      _
    // Predicated region
    $region42: #{tpu_custom_call.1} parent=1 // pred_check
      _
    $region43: #{tpu_custom_call.1} parent=1 // pred_check_branch
      %684 = sbr.rel (0) target = $region45
    $region44: #{tpu_custom_call.1} parent=1 // pred_region
      %685 = dma.done [#allocation6], 128
    $region45: #{tpu_custom_call.1} parent=1 // pred_fallthru
      _
    %686 = vsyncpa [#allocation6], 1

</llo_original>
